<compile_context>
chip_gen: v6e
topology: v6e:2x2x1
jax: 0.10.0
libtpu: 0.0.40
codegen_flags: <defaults>
</compile_context>

<pallas_src>
import functools

import jax
import jax.numpy as jnp
from jax.experimental import pallas as pl
from jax.experimental.pallas import tpu as pltpu


def _round_up(n, m):
    return ((n + m - 1) // m) * m


def _largest_divisor_leq(n, cap):
    cap = max(1, min(n, cap))
    for d in range(cap, 0, -1):
        if n % d == 0:
            return d
    return 1


def _vmem_budget_and_cap():
    """Per-generation VMEM budget (for x in+out slabs) and max vmem_limit."""
    try:
        cap = int(pltpu.get_tpu_info().vmem_capacity_bytes)
    except Exception:
        cap = 64 * 1024 * 1024            # conservative: v7x per-TensorCore VMEM
    cap = max(cap, 32 * 1024 * 1024)
    budget = (cap * 5) // 8               # 128 MiB -> 80 MiB ; 64 MiB -> 40 MiB
    max_limit = (cap * 7) // 8            # 128 MiB -> 112 MiB ; 64 MiB -> 56 MiB
    return budget, max_limit


# --------------------------------------------------------------------------
# Primary kernel: one full (Nb, C, HW) spatial slab per grid step.
# --------------------------------------------------------------------------
def _ca_kernel(x_ref, w1_ref, b1_ref, w2t_ref, b2_ref, o_ref, *, inv_hw, cr):
    # Global average pool: reduce straight out of the ref with f32 accumulation.
    # Do NOT keep a slab-sized value live until the final scale (it cannot fit
    # in vregs and would force Mosaic to spill a second copy of the slab).
    mean = jnp.sum(x_ref[...], axis=-1, dtype=jnp.float32) * inv_hw     # (Nb, C)

    # Squeeze (C -> Cr) + ReLU: VPU broadcast-mul + XLU lane reduce (tiny);
    # a width-1 MXU matvec would be pure pipeline-fill latency here.
    h = jnp.sum(w1_ref[...][None, :, :] * mean[:, None, :], axis=-1) + b1_ref[...]
    h = jnp.maximum(h, 0.0)                                             # (Nb, Cr)

    # Excite (Cr -> C) + sigmoid: unrolled over Cr (Cr ~ 4) keeping C dense in
    # lanes -> pure VPU, no (Nb, C, Cr) intermediate, no cross-lane reduce.
    y = b2_ref[...].astype(jnp.float32)                                 # (1, C)
    for r in range(cr):
        y = y + h[:, r:r + 1] * w2t_ref[r, :][None, :]                  # (Nb, C)
    y = jax.nn.sigmoid(y)                                               # (Nb, C)

    # Scale in the input dtype: re-read the VMEM-resident slab and store.
    scale = y.astype(o_ref.dtype)[:, :, None]                           # (Nb, C, 1)
    o_ref[...] = x_ref[...] * scale


# --------------------------------------------------------------------------
# Fallback (large H*W): pass 1 — channel/spatial-tiled global average pool.
# --------------------------------------------------------------------------
def _pool_kernel(x_ref, sum_ref, *, hw, t_hw):
    j = pl.program_id(2)

    @pl.when(j == 0)
    def _():
        sum_ref[...] = jnp.zeros_like(sum_ref)

    x = x_ref[...]                                                      # (1, Ct, t_hw)
    if hw % t_hw == 0:
        part = jnp.sum(x, axis=-1, dtype=jnp.float32)                   # (1, Ct)
    else:
        # Mask the padded tail of the last (partial) spatial tile.
        col = jax.lax.broadcasted_iota(jnp.int32, x.shape, 2)
        valid = col < (hw - j * t_hw)
        part = jnp.sum(jnp.where(valid, x, jnp.zeros((), x.dtype)),
                       axis=-1, dtype=jnp.float32)
    sum_ref[...] += part[:, None, None, :]                              # (1, 1, 1, Ct)


# --------------------------------------------------------------------------
# Fallback: pass 2 — out = x * y, broadcast over spatial.
# --------------------------------------------------------------------------
def _scale_kernel(y_ref, x_ref, o_ref):
    # y already cast to x dtype in the wrapper; out-of-bounds tail lanes rely
    # on standard Pallas output-block clipping on writeback.
    o_ref[...] = x_ref[...] * y_ref[...]


def ca_layer(x, w1, b1, w2, b2, *, vmem_budget_bytes=None):
    """CALayer forward.  x: (N, C, H, W); w1: (Cr, C); b1: (Cr,); w2: (C, Cr); b2: (C,)."""
    N, C, H, W = x.shape
    Cr = w1.shape[0]
    HW = H * W
    dbytes = x.dtype.itemsize

    auto_budget, max_limit = _vmem_budget_and_cap()
    budget = auto_budget if vmem_budget_bytes is None else vmem_budget_bytes

    x_flat = x.reshape(N, C, HW)
    w2_t = w2.T                                   # (Cr, C): lane-dense excite rows
    b1_row = b1.reshape(1, Cr)
    b2_row = b2.reshape(1, C)
    wbytes = (w1.size + b1.size + w2.size + b2.size) * 4

    slab_bytes = 4 * C * HW * dbytes              # Nb=1: in + out, double-buffered

    if slab_bytes <= budget:
        # ---- primary path: full spatial slab, Nb batch images per grid step ----
        nb_cap = max(1, budget // slab_bytes)
        if N >= 4:
            nb_cap = min(nb_cap, N // 4)          # >=4 steps: 2/TC on v7x, pipelined
        elif N >= 2:
            nb_cap = min(nb_cap, N // 2)          # >=2 steps: keep both v7x TCs busy
        Nb = _largest_divisor_leq(N, nb_cap)

        # vmem limit tied to the actual block footprint (+ headroom), clipped to
        # the per-generation ceiling.
        footprint = 4 * Nb * C * HW * dbytes + 2 * wbytes
        vmem_limit = int(min(max_limit, footprint + 4 * 1024 * 1024))
        vmem_limit = int(max(vmem_limit, 8 * 1024 * 1024))

        out = pl.pallas_call(
            functools.partial(_ca_kernel, inv_hw=1.0 / HW, cr=Cr),
            out_shape=jax.ShapeDtypeStruct((N, C, HW), x.dtype),
            grid_spec=pltpu.PrefetchScalarGridSpec(
                num_scalar_prefetch=0,
                grid=(N // Nb,),
                in_specs=[
                    pl.BlockSpec((Nb, C, HW), lambda n: (n, 0, 0)),
                    pl.BlockSpec((Cr, C), lambda n: (0, 0)),
                    pl.BlockSpec((1, Cr), lambda n: (0, 0)),
                    pl.BlockSpec((Cr, C), lambda n: (0, 0)),
                    pl.BlockSpec((1, C), lambda n: (0, 0)),
                ],
                out_specs=pl.BlockSpec((Nb, C, HW), lambda n: (n, 0, 0)),
            ),
            compiler_params=pltpu.CompilerParams(
                dimension_semantics=("parallel",),
                vmem_limit_bytes=vmem_limit),
            cost_estimate=pl.CostEstimate(
                flops=2 * N * C * HW + 4 * N * C * Cr,
                transcendentals=N * C,
                bytes_accessed=2 * N * C * HW * dbytes),
        )(x_flat, w1, b1_row, w2_t, b2_row)
        return out.reshape(N, C, H, W)

    # ---- fallback: HW-tiled two-pass (very large spatial) ----------------------
    # Pass 1: global average pool with a parallel channel-tile axis so a second
    # TensorCore has work even when N == 1.
    Ct = C // 2 if (C % 2 == 0 and (C // 2) % 8 == 0) else C
    n_ct = C // Ct

    # Pool pass only double-buffers its input (no output slab): factor-2 footprint
    # -> ~2x larger spatial tile than the scale pass, fewer grid-step overheads.
    t_hw_pool = max(128, (budget // (2 * Ct * dbytes)) // 128 * 128)
    t_hw_pool = min(t_hw_pool, _round_up(HW, 128))
    n_hw_pool = pl.cdiv(HW, t_hw_pool)
    pool_limit = int(max(8 * 1024 * 1024,
                         min(max_limit, 2 * Ct * t_hw_pool * dbytes + 4 * 1024 * 1024)))

    sums = pl.pallas_call(
        functools.partial(_pool_kernel, hw=HW, t_hw=t_hw_pool),
        out_shape=jax.ShapeDtypeStruct((N, n_ct, 1, Ct), jnp.float32),
        grid_spec=pltpu.PrefetchScalarGridSpec(
            num_scalar_prefetch=0,
            grid=(N, n_ct, n_hw_pool),
            in_specs=[pl.BlockSpec((1, Ct, t_hw_pool), lambda n, c, j: (n, c, j))],
            out_specs=pl.BlockSpec((1, 1, 1, Ct), lambda n, c, j: (n, c, 0, 0)),
        ),
        compiler_params=pltpu.CompilerParams(
            dimension_semantics=("parallel", "parallel", "arbitrary"),
            vmem_limit_bytes=pool_limit),
        cost_estimate=pl.CostEstimate(
            flops=N * C * HW, transcendentals=0,
            bytes_accessed=N * C * HW * dbytes),
    )(x_flat)

    # Tiny squeeze-excite on the (N, C) pooled means: negligible, plain JAX.
    means = sums.reshape(N, C) * (1.0 / HW)                    # (N, C) f32
    h = jnp.maximum(means @ w1.T + b1_row, 0.0)                # (N, Cr)
    y = jax.nn.sigmoid(h @ w2.T + b2_row)                      # (N, C)
    y_col = y.reshape(N, C, 1).astype(x.dtype)

    # Pass 2: scale by the per-channel gate (input + output -> factor-4 footprint).
    t_hw_scale = max(128, (budget // (4 * C * dbytes)) // 128 * 128)
    t_hw_scale = min(t_hw_scale, _round_up(HW, 128))
    n_hw_scale = pl.cdiv(HW, t_hw_scale)
    scale_limit = int(max(8 * 1024 * 1024,
                          min(max_limit, 4 * C * t_hw_scale * dbytes + 4 * 1024 * 1024)))

    out = pl.pallas_call(
        _scale_kernel,
        out_shape=jax.ShapeDtypeStruct((N, C, HW), x.dtype),
        grid_spec=pltpu.PrefetchScalarGridSpec(
            num_scalar_prefetch=0,
            grid=(N, n_hw_scale),
            in_specs=[
                pl.BlockSpec((1, C, 1), lambda n, j: (n, 0, 0)),
                pl.BlockSpec((1, C, t_hw_scale), lambda n, j: (n, 0, j)),
            ],
            out_specs=pl.BlockSpec((1, C, t_hw_scale), lambda n, j: (n, 0, j)),
        ),
        compiler_params=pltpu.CompilerParams(
            dimension_semantics=("parallel", "parallel"),
            vmem_limit_bytes=scale_limit),
        cost_estimate=pl.CostEstimate(
            flops=N * C * HW, transcendentals=0,
            bytes_accessed=2 * N * C * HW * dbytes),
    )(y_col, x_flat)
    return out.reshape(N, C, H, W)


def ca_layer_ref(x, w1, b1, w2, b2):
    """Pure-JAX reference matching the PyTorch CALayer forward."""
    xf = x.astype(jnp.float32)
    m = jnp.mean(xf, axis=(2, 3))                              # (N, C)
    h = jnp.maximum(m @ w1.T + b1[None, :], 0.0)               # (N, Cr)
    y = jax.nn.sigmoid(h @ w2.T + b2[None, :])                 # (N, C)
    return (xf * y[:, :, None, None]).astype(x.dtype)


if __name__ == "__main__":
    # Module config: channel=64, reduction=16 -> hidden Cr = 4.
    N, C, H, W = 2, 64, 16, 16
    reduction = 16
    Cr = C // reduction

    key = jax.random.PRNGKey(0)
    kx, k1, k2, k3, k4 = jax.random.split(key, 5)

    x = jax.random.normal(kx, (N, C, H, W), dtype=jnp.float32)
    w1 = jax.random.normal(k1, (Cr, C), dtype=jnp.float32) * 0.1   # conv_du[0].weight (1x1, squeezed)
    b1 = jax.random.normal(k2, (Cr,), dtype=jnp.float32) * 0.1     # conv_du[0].bias
    w2 = jax.random.normal(k3, (C, Cr), dtype=jnp.float32) * 0.1   # conv_du[2].weight (1x1, squeezed)
    b2 = jax.random.normal(k4, (C,), dtype=jnp.float32) * 0.1      # conv_du[2].bias

    ref = jax.block_until_ready(ca_layer_ref(x, w1, b1, w2, b2))

    # Primary path: fused single-pass, full (C, HW) spatial slab per grid step.
    out = jax.block_until_ready(ca_layer(x, w1, b1, w2, b2))
    assert out.shape == x.shape and out.dtype == x.dtype
    assert jnp.allclose(out, ref, atol=1e-5, rtol=1e-5), "primary path mismatch"

    # Fallback path: force the HW-tiled two-pass variant with a tiny budget.
    out_tiled = jax.block_until_ready(
        ca_layer(x, w1, b1, w2, b2, vmem_budget_bytes=128 * 1024))
    assert jnp.allclose(out_tiled, ref, atol=1e-5, rtol=1e-5), "tiled path mismatch"

    print("KERNEL_OK")
</pallas_src>

<mosaic_0001>
module attributes {stable_mosaic.version = 11 : i64} {
  func.func @_ca_kernel(%arg0: i32, %arg1: memref<1x64x256xf32, #tpu.memory_space<vmem>>, %arg2: memref<4x64xf32, #tpu.memory_space<vmem>>, %arg3: memref<1x4xf32, #tpu.memory_space<vmem>>, %arg4: memref<4x64xf32, #tpu.memory_space<vmem>>, %arg5: memref<1x64xf32, #tpu.memory_space<vmem>>, %arg6: memref<1x64x256xf32, #tpu.memory_space<vmem>>) attributes {dimension_semantics = [#tpu.dimension_semantics<parallel>], iteration_bounds = array<i64: 2>, scalar_prefetch = 0 : i64, scratch_operands = 0 : i64, tpu.core_type = #tpu.core_type<tc>, window_params = [{transform_indices = @transform_0, window_bounds = array<i64: 1, 64, 256>}, {pipeline_mode = #tpu.pipeline_mode<synchronous>, transform_indices = @transform_1, window_bounds = array<i64: 4, 64>}, {pipeline_mode = #tpu.pipeline_mode<synchronous>, transform_indices = @transform_2, window_bounds = array<i64: 1, 4>}, {pipeline_mode = #tpu.pipeline_mode<synchronous>, transform_indices = @transform_3, window_bounds = array<i64: 4, 64>}, {pipeline_mode = #tpu.pipeline_mode<synchronous>, transform_indices = @transform_4, window_bounds = array<i64: 1, 64>}, {transform_indices = @transform_5, window_bounds = array<i64: 1, 64, 256>}]} {
    %c0 = arith.constant 0 : index
    %c0_0 = arith.constant 0 : index
    %c0_1 = arith.constant 0 : index
    %0 = vector.load %arg1[%c0, %c0_0, %c0_1] : memref<1x64x256xf32, #tpu.memory_space<vmem>>, vector<1x64x256xf32>
    %cst = arith.constant dense<0.000000e+00> : vector<1x64xf32>
    %1 = vector.multi_reduction <add>, %0, %cst [2] : vector<1x64x256xf32> to vector<1x64xf32>
    %cst_2 = arith.constant 3.906250e-03 : f32
    %2 = vector.broadcast %cst_2 : f32 to vector<1x64xf32>
    %3 = arith.mulf %1, %2 : vector<1x64xf32>
    %c0_3 = arith.constant 0 : index
    %c0_4 = arith.constant 0 : index
    %4 = vector.load %arg2[%c0_3, %c0_4] : memref<4x64xf32, #tpu.memory_space<vmem>>, vector<4x64xf32>
    %5 = vector.shape_cast %4 : vector<4x64xf32> to vector<1x4x64xf32>
    %6 = vector.shape_cast %3 : vector<1x64xf32> to vector<1x1x64xf32>
    %7 = vector.broadcast %6 : vector<1x1x64xf32> to vector<1x4x64xf32>
    %8 = arith.mulf %5, %7 : vector<1x4x64xf32>
    %cst_5 = arith.constant dense<0.000000e+00> : vector<1x4xf32>
    %9 = vector.multi_reduction <add>, %8, %cst_5 [2] : vector<1x4x64xf32> to vector<1x4xf32>
    %c0_6 = arith.constant 0 : index
    %c0_7 = arith.constant 0 : index
    %10 = vector.load %arg3[%c0_6, %c0_7] : memref<1x4xf32, #tpu.memory_space<vmem>>, vector<1x4xf32>
    %11 = arith.addf %9, %10 : vector<1x4xf32>
    %cst_8 = arith.constant 0.000000e+00 : f32
    %12 = vector.broadcast %cst_8 : f32 to vector<1x4xf32>
    %13 = arith.maximumf %11, %12 : vector<1x4xf32>
    %c0_9 = arith.constant 0 : index
    %c0_10 = arith.constant 0 : index
    %14 = vector.load %arg5[%c0_9, %c0_10] : memref<1x64xf32, #tpu.memory_space<vmem>>, vector<1x64xf32>
    %15 = vector.extract_strided_slice %13 {offsets = [0, 0], sizes = [1, 1], strides = [1, 1]} : vector<1x4xf32> to vector<1x1xf32>
    %c0_11 = arith.constant 0 : index
    %c0_12 = arith.constant 0 : index
    %16 = vector.load %arg4[%c0_11, %c0_12] : memref<4x64xf32, #tpu.memory_space<vmem>>, vector<1x64xf32>
    %17 = vector.shape_cast %16 : vector<1x64xf32> to vector<64xf32>
    %18 = vector.shape_cast %17 : vector<64xf32> to vector<1x64xf32>
    %19 = vector.broadcast %15 : vector<1x1xf32> to vector<1x64xf32>
    %20 = arith.mulf %19, %18 : vector<1x64xf32>
    %21 = arith.addf %14, %20 : vector<1x64xf32>
    %22 = vector.extract_strided_slice %13 {offsets = [0, 1], sizes = [1, 1], strides = [1, 1]} : vector<1x4xf32> to vector<1x1xf32>
    %c1 = arith.constant 1 : index
    %c0_13 = arith.constant 0 : index
    %23 = vector.load %arg4[%c1, %c0_13] : memref<4x64xf32, #tpu.memory_space<vmem>>, vector<1x64xf32>
    %24 = vector.shape_cast %23 : vector<1x64xf32> to vector<64xf32>
    %25 = vector.shape_cast %24 : vector<64xf32> to vector<1x64xf32>
    %26 = vector.broadcast %22 : vector<1x1xf32> to vector<1x64xf32>
    %27 = arith.mulf %26, %25 : vector<1x64xf32>
    %28 = arith.addf %21, %27 : vector<1x64xf32>
    %29 = vector.extract_strided_slice %13 {offsets = [0, 2], sizes = [1, 1], strides = [1, 1]} : vector<1x4xf32> to vector<1x1xf32>
    %c2 = arith.constant 2 : index
    %c0_14 = arith.constant 0 : index
    %30 = vector.load %arg4[%c2, %c0_14] : memref<4x64xf32, #tpu.memory_space<vmem>>, vector<1x64xf32>
    %31 = vector.shape_cast %30 : vector<1x64xf32> to vector<64xf32>
    %32 = vector.shape_cast %31 : vector<64xf32> to vector<1x64xf32>
    %33 = vector.broadcast %29 : vector<1x1xf32> to vector<1x64xf32>
    %34 = arith.mulf %33, %32 : vector<1x64xf32>
    %35 = arith.addf %28, %34 : vector<1x64xf32>
    %36 = vector.extract_strided_slice %13 {offsets = [0, 3], sizes = [1, 1], strides = [1, 1]} : vector<1x4xf32> to vector<1x1xf32>
    %c3 = arith.constant 3 : index
    %c0_15 = arith.constant 0 : index
    %37 = vector.load %arg4[%c3, %c0_15] : memref<4x64xf32, #tpu.memory_space<vmem>>, vector<1x64xf32>
    %38 = vector.shape_cast %37 : vector<1x64xf32> to vector<64xf32>
    %39 = vector.shape_cast %38 : vector<64xf32> to vector<1x64xf32>
    %40 = vector.broadcast %36 : vector<1x1xf32> to vector<1x64xf32>
    %41 = arith.mulf %40, %39 : vector<1x64xf32>
    %42 = arith.addf %35, %41 : vector<1x64xf32>
    %43 = arith.negf %42 : vector<1x64xf32>
    %44 = math.exp %43 : vector<1x64xf32>
    %cst_16 = arith.constant 1.000000e+00 : f32
    %45 = vector.broadcast %cst_16 : f32 to vector<1x64xf32>
    %46 = arith.addf %45, %44 : vector<1x64xf32>
    %47 = arith.divf %45, %46 : vector<1x64xf32>
    %48 = vector.shape_cast %47 : vector<1x64xf32> to vector<1x64x1xf32>
    %c0_17 = arith.constant 0 : index
    %c0_18 = arith.constant 0 : index
    %c0_19 = arith.constant 0 : index
    %49 = vector.load %arg1[%c0_17, %c0_18, %c0_19] : memref<1x64x256xf32, #tpu.memory_space<vmem>>, vector<1x64x256xf32>
    %50 = vector.broadcast %48 : vector<1x64x1xf32> to vector<1x64x256xf32>
    %51 = arith.mulf %49, %50 : vector<1x64x256xf32>
    %c0_20 = arith.constant 0 : index
    %c0_21 = arith.constant 0 : index
    %c0_22 = arith.constant 0 : index
    %52 = vector.load %arg6[%c0_20, %c0_21, %c0_22] : memref<1x64x256xf32, #tpu.memory_space<vmem>>, vector<1x64x256xf32>
    tpu.vector_store %arg6[%c0_20, %c0_21, %c0_22], %51 {strides = array<i32>} : memref<1x64x256xf32, #tpu.memory_space<vmem>>, vector<1x64x256xf32>,
    return
  }
  func.func @transform_0(%arg0: i32) -> (i32, i32, i32) {
    %c0_i32 = arith.constant 0 : i32
    %c0_i32_0 = arith.constant 0 : i32
    %c0_i32_1 = arith.constant 0 : i32
    return %arg0, %c0_i32, %c0_i32_0 : i32, i32, i32
  }
  func.func @transform_1(%arg0: i32) -> (i32, i32) {
    %c0_i32 = arith.constant 0 : i32
    %c0_i32_0 = arith.constant 0 : i32
    %c0_i32_1 = arith.constant 0 : i32
    return %c0_i32, %c0_i32_0 : i32, i32
  }
  func.func @transform_2(%arg0: i32) -> (i32, i32) {
    %c0_i32 = arith.constant 0 : i32
    %c0_i32_0 = arith.constant 0 : i32
    %c0_i32_1 = arith.constant 0 : i32
    return %c0_i32, %c0_i32_0 : i32, i32
  }
  func.func @transform_3(%arg0: i32) -> (i32, i32) {
    %c0_i32 = arith.constant 0 : i32
    %c0_i32_0 = arith.constant 0 : i32
    %c0_i32_1 = arith.constant 0 : i32
    return %c0_i32, %c0_i32_0 : i32, i32
  }
  func.func @transform_4(%arg0: i32) -> (i32, i32) {
    %c0_i32 = arith.constant 0 : i32
    %c0_i32_0 = arith.constant 0 : i32
    %c0_i32_1 = arith.constant 0 : i32
    return %c0_i32, %c0_i32_0 : i32, i32
  }
  func.func @transform_5(%arg0: i32) -> (i32, i32, i32) {
    %c0_i32 = arith.constant 0 : i32
    %c0_i32_0 = arith.constant 0 : i32
    %c0_i32_1 = arith.constant 0 : i32
    return %arg0, %c0_i32, %c0_i32_0 : i32, i32, i32
  }
}

</mosaic_0001>

<llo_original>
// kernel: tpu_custom_call.1
$region0: #{tpu_custom_call.1}
  #allocation0 [shape = 'u32[]', space=smem, size = 0x4, offset = 0x4, fixed_abs, tag = 'smem constant byte address 0x4 - core index']
  #allocation1 [shape = 'u32[144,128]{1,0:T(1,128)}', space=vmem, size = 0x12000, scoped, tag = 'internal scratch']
  %s0 = inlined_call_operand.hbm [shape: f32[2,64,256], index: 0, kind: input, shape index: {}]
  %s1 = inlined_call_operand.hbm [shape: f32[4,64], index: 1, kind: input, shape index: {}]
  %s2 = inlined_call_operand.vmem [shape: f32[1,4], index: 2, kind: input, shape index: {}]
  %s3 = inlined_call_operand.vmem [shape: f32[4,64], index: 3, kind: input, shape index: {}]
  %s4 = inlined_call_operand.vmem [shape: f32[1,64], index: 4, kind: input, shape index: {}]
  %s5 = inlined_call_operand.hbm [shape: f32[2,64,256], index: 5, kind: output, shape index: {}]
  %s6 = sld [smem:[#allocation0]]
  $region61: #{tpu_custom_call.1} parent=0
    _
  %s8 = ssub.s32 1, %s6
  %s9 = scalar_select 0, %s8, %s6
  $region1: #{tpu_custom_call.1} parent=0
    #allocation2 [shape = 'u8[131072]{0}', space=vmem, size = 0x20000, scoped, tag = 'input window, operand 0']
    #allocation3 [shape = 's32[2]{0}', space=sflag, size = 0x8, scoped, tag = 'scoped memory for tpu_custom_call.1']
    #allocation4 [shape = 's32[2]{0}', space=sflag, size = 0x8, scoped, tag = 'scoped memory for tpu_custom_call.1']
    #allocation5 [shape = 'u8[2048]{0}', space=vmem, size = 0x800, scoped, tag = 'input window, operand 1, single buffered']
    #allocation6 [shape = 's32[1]{0}', space=sflag, size = 0x4, scoped, tag = 'scoped memory for tpu_custom_call.1']
    #allocation7 [shape = 'u8[131072]{0}', space=vmem, size = 0x20000, scoped, tag = 'output window, operand 0']
    %10 = vsyncpa [#allocation3], 0
    %s11 = scalar_lea.sflag [#allocation3], 1
    %12 = vsyncpa %s11, 0
    %13 = vsyncpa [#allocation6], 0
    %14 = vsyncpa [#allocation4], 0
    %s15 = scalar_lea.sflag [#allocation4], 1
    %16 = vsyncpa %s15, 0
    loop: start=0, step=1, limit=4
    $region2: #{tpu_custom_call.1} parent=1 // loop_pre_header
      _
    $region3: #{tpu_custom_call.1} parent=1 // loop_header
      %s18 = sphi 0, %s22
      %p19 = scmp.ge.s32.totalorder %s18, 4
      %s28 = sphi 0, %s30
      %s31 = sphi 0, %s28
      %s32 = sphi 0, %s31
      %s48 = sphi 0, %s32
      %s52 = sphi 0, %s52
      %s54 = sphi 0, %s52
      %s55 = sphi 0, %s54
      %s69 = sphi 0, %s55
      %s73 = sphi 0, %s73
      %s75 = sphi 0, %s73
      %s76 = sphi 0, %s75
      %s90 = sphi 0, %s76
      %s94 = sphi 0, %s94
      %s96 = sphi 0, %s94
      %s97 = sphi 0, %s96
      %s111 = sphi 0, %s97
      %s115 = sphi 0, %s115
      %s117 = sphi 0, %s115
      %s118 = sphi 0, %s117
      %s132 = sphi 0, %s118
      %s138 = sphi 0, %s140
      %s141 = sphi 0, %s138
      %s142 = sphi 0, %s141
      %s158 = sphi 0, %s142
    $region4: #{tpu_custom_call.1} parent=1 // loop_header_branch
      %21 = sbr.rel (%p19) target = $region8
    $region5: #{tpu_custom_call.1} parent=1 // loop_body
      %s23 = ssub.s32 %s18, 1
      %s24 = ssub.s32 %s18, 2
      %s25 = sadd.s32 %s18, 1
      %s26 = ssub.s32 %s18, %s25
      %p27 = scmp.eq.s32.totalorder %s26, 0
      %s29 = sadd.s32 %s28, 1
      %s30 = scalar_select %p27, %s28, %s29
      %p33 = pneg %p27
      %p34 = scmp.eq.s32.totalorder %s18, 1
      %p35 = por %p33, %p34
      %p36 = scmp.ne.s32.totalorder %s28, %s31
      %p37 = scmp.eq.s32.totalorder %s18, 0
      %p38 = por %p36, %p37
      %p39 = scmp.ne.s32.totalorder %s28, %s31
      %p40 = scmp.eq.s32.totalorder %s23, 1
      %p41 = por %p39, %p40
      %p42 = scmp.ne.s32.totalorder %s31, %s32
      %p43 = scmp.eq.s32.totalorder %s23, 0
      %p44 = por %p42, %p43
      %p45 = scmp.ne.s32.totalorder %s31, %s32
      %p46 = scmp.eq.s32.totalorder %s24, 1
      %p47 = por %p45, %p46
      %p49 = scmp.ne.s32.totalorder %s32, %s48
      %p50 = scmp.eq.s32.totalorder %s24, 0
      %p51 = por %p49, %p50
      %s53 = sadd.s32 %s52, 1
      %p56 = scmp.eq.s32.totalorder %s18, 1
      %p57 = scmp.ne.s32.totalorder %s52, %s54
      %p58 = scmp.eq.s32.totalorder %s18, 0
      %p59 = por %p57, %p58
      %p60 = scmp.ne.s32.totalorder %s52, %s54
      %p61 = scmp.eq.s32.totalorder %s23, 1
      %p62 = por %p60, %p61
      %p63 = scmp.ne.s32.totalorder %s54, %s55
      %p64 = scmp.eq.s32.totalorder %s23, 0
      %p65 = por %p63, %p64
      %p66 = scmp.ne.s32.totalorder %s54, %s55
      %p67 = scmp.eq.s32.totalorder %s24, 1
      %p68 = por %p66, %p67
      %p70 = scmp.ne.s32.totalorder %s55, %s69
      %p71 = scmp.eq.s32.totalorder %s24, 0
      %p72 = por %p70, %p71
      %s74 = sadd.s32 %s73, 1
      %p77 = scmp.eq.s32.totalorder %s18, 1
      %p78 = scmp.ne.s32.totalorder %s73, %s75
      %p79 = scmp.eq.s32.totalorder %s18, 0
      %p80 = por %p78, %p79
      %p81 = scmp.ne.s32.totalorder %s73, %s75
      %p82 = scmp.eq.s32.totalorder %s23, 1
      %p83 = por %p81, %p82
      %p84 = scmp.ne.s32.totalorder %s75, %s76
      %p85 = scmp.eq.s32.totalorder %s23, 0
      %p86 = por %p84, %p85
      %p87 = scmp.ne.s32.totalorder %s75, %s76
      %p88 = scmp.eq.s32.totalorder %s24, 1
      %p89 = por %p87, %p88
      %p91 = scmp.ne.s32.totalorder %s76, %s90
      %p92 = scmp.eq.s32.totalorder %s24, 0
      %p93 = por %p91, %p92
      %s95 = sadd.s32 %s94, 1
      %p98 = scmp.eq.s32.totalorder %s18, 1
      %p99 = scmp.ne.s32.totalorder %s94, %s96
      %p100 = scmp.eq.s32.totalorder %s18, 0
      %p101 = por %p99, %p100
      %p102 = scmp.ne.s32.totalorder %s94, %s96
      %p103 = scmp.eq.s32.totalorder %s23, 1
      %p104 = por %p102, %p103
      %p105 = scmp.ne.s32.totalorder %s96, %s97
      %p106 = scmp.eq.s32.totalorder %s23, 0
      %p107 = por %p105, %p106
      %p108 = scmp.ne.s32.totalorder %s96, %s97
      %p109 = scmp.eq.s32.totalorder %s24, 1
      %p110 = por %p108, %p109
      %p112 = scmp.ne.s32.totalorder %s97, %s111
      %p113 = scmp.eq.s32.totalorder %s24, 0
      %p114 = por %p112, %p113
      %s116 = sadd.s32 %s115, 1
      %p119 = scmp.eq.s32.totalorder %s18, 1
      %p120 = scmp.ne.s32.totalorder %s115, %s117
      %p121 = scmp.eq.s32.totalorder %s18, 0
      %p122 = por %p120, %p121
      %p123 = scmp.ne.s32.totalorder %s115, %s117
      %p124 = scmp.eq.s32.totalorder %s23, 1
      %p125 = por %p123, %p124
      %p126 = scmp.ne.s32.totalorder %s117, %s118
      %p127 = scmp.eq.s32.totalorder %s23, 0
      %p128 = por %p126, %p127
      %p129 = scmp.ne.s32.totalorder %s117, %s118
      %p130 = scmp.eq.s32.totalorder %s24, 1
      %p131 = por %p129, %p130
      %p133 = scmp.ne.s32.totalorder %s118, %s132
      %p134 = scmp.eq.s32.totalorder %s24, 0
      %p135 = por %p133, %p134
      %s136 = ssub.s32 %s18, %s25
      %p137 = scmp.eq.s32.totalorder %s136, 0
      %s139 = sadd.s32 %s138, 1
      %s140 = scalar_select %p137, %s138, %s139
      %p143 = pneg %p137
      %p144 = scmp.eq.s32.totalorder %s18, 1
      %p145 = por %p143, %p144
      %p146 = scmp.ne.s32.totalorder %s138, %s141
      %p147 = scmp.eq.s32.totalorder %s18, 0
      %p148 = por %p146, %p147
      %p149 = scmp.ne.s32.totalorder %s138, %s141
      %p150 = scmp.eq.s32.totalorder %s23, 1
      %p151 = por %p149, %p150
      %p152 = scmp.ne.s32.totalorder %s141, %s142
      %p153 = scmp.eq.s32.totalorder %s23, 0
      %p154 = por %p152, %p153
      %p155 = scmp.ne.s32.totalorder %s141, %s142
      %p156 = scmp.eq.s32.totalorder %s24, 1
      %p157 = por %p155, %p156
      %p159 = scmp.ne.s32.totalorder %s142, %s158
      %p160 = scmp.eq.s32.totalorder %s24, 0
      %p161 = por %p159, %p160
      %p162 = scmp.le.s32.totalorder 1, %s18
      %p163 = scmp.lt.s32.totalorder %s18, 3
      %p164 = pnand %p162, %p163
      %p165 = pneg %p164
      // Predicated region
      $region9: #{tpu_custom_call.1} parent=5 // pred_check
        _
      $region10: #{tpu_custom_call.1} parent=5 // pred_check_branch
        %167 = sbr.rel (%p164) target = $region12
      $region11: #{tpu_custom_call.1} parent=5 // pred_region
        %s168 = ssub.s32 %s18, 1
        // Predicated region
        $region13: #{tpu_custom_call.1} parent=11 // pred_check
          %p169 = pneg %p65
        $region14: #{tpu_custom_call.1} parent=11 // pred_check_branch
          %171 = sbr.rel (%p169) target = $region16
        $region15: #{tpu_custom_call.1} parent=11 // pred_region
          %s173 = ssub.s32 64, 64
          %174 = vsyncadd [#allocation6], %s173
          %s176 = sshll.u32 [#allocation5], 4
          %s177 = int_to_ptr.vmem [resolvable:$true] %s176
          %179 = dma.hbm_to_vmem [thread:$0]  %s1, 64, %s177, [#allocation6]
        $region16: #{tpu_custom_call.1} parent=11 // pred_fallthru
          _
        // Predicated region
        $region17: #{tpu_custom_call.1} parent=11 // pred_check
          %p180 = pneg %p86
        $region18: #{tpu_custom_call.1} parent=11 // pred_check_branch
          %182 = sbr.rel (%p180) target = $region20
        $region19: #{tpu_custom_call.1} parent=11 // pred_region
          _
        $region20: #{tpu_custom_call.1} parent=11 // pred_fallthru
          _
        // Predicated region
        $region21: #{tpu_custom_call.1} parent=11 // pred_check
          %p183 = pneg %p107
        $region22: #{tpu_custom_call.1} parent=11 // pred_check_branch
          %185 = sbr.rel (%p183) target = $region24
        $region23: #{tpu_custom_call.1} parent=11 // pred_region
          _
        $region24: #{tpu_custom_call.1} parent=11 // pred_fallthru
          _
        // Predicated region
        $region25: #{tpu_custom_call.1} parent=11 // pred_check
          %p186 = pneg %p128
        $region26: #{tpu_custom_call.1} parent=11 // pred_check_branch
          %188 = sbr.rel (%p186) target = $region28
        $region27: #{tpu_custom_call.1} parent=11 // pred_region
          _
        $region28: #{tpu_custom_call.1} parent=11 // pred_fallthru
          _
      $region12: #{tpu_custom_call.1} parent=5 // pred_fallthru
        _
      %p189 = scmp.lt.s32.totalorder %s18, 2
      // Predicated region
      $region29: #{tpu_custom_call.1} parent=5 // pred_check
        %p190 = pneg %p189
      $region30: #{tpu_custom_call.1} parent=5 // pred_check_branch
        %192 = sbr.rel (%p190) target = $region32
      $region31: #{tpu_custom_call.1} parent=5 // pred_region
        // Predicated region
        $region33: #{tpu_custom_call.1} parent=31 // pred_check
          %p193 = pneg %p38
        $region34: #{tpu_custom_call.1} parent=31 // pred_check_branch
          %195 = sbr.rel (%p193) target = $region36
        $region35: #{tpu_custom_call.1} parent=31 // pred_region
          %s196 = sand.u32 %s28, 1
          %s197 = scalar_lea.sflag [#allocation3], %s196
          %s198 = sand.u32 %s28, 1
          %s199 = smul.addr %s198, 128
          %s200 = scalar_lea.vmem [#allocation2], %s199
          %s202 = ssub.s32 2048, 2048
          %203 = vsyncadd %s197, %s202
          %s204 = smul.addr %s18, 16
          %s205 = smul.addr %s204, 128
          %s206 = scalar_lea.hbm %s0, %s205
          %s207 = sshll.u32 %s200, 4
          %s208 = int_to_ptr.vmem [resolvable:$true] %s207
          %213 = dma.hbm_to_vmem [thread:$0]  %s206, 2048, %s208, %s197, 256, 256, 16
        $region36: #{tpu_custom_call.1} parent=31 // pred_fallthru
          _
      $region32: #{tpu_custom_call.1} parent=5 // pred_fallthru
        _
      %p214 = scmp.le.s32.totalorder 1, %s18
      %p215 = scmp.lt.s32.totalorder %s18, 3
      %p216 = pnand %p214, %p215
      %p217 = pneg %p216
      // Predicated region
      $region37: #{tpu_custom_call.1} parent=5 // pred_check
        _
      $region38: #{tpu_custom_call.1} parent=5 // pred_check_branch
        %219 = sbr.rel (%p216) target = $region40
      $region39: #{tpu_custom_call.1} parent=5 // pred_region
        %s220 = ssub.s32 %s18, 1
        %s221 = sand.u32 %s31, 1
        %s222 = scalar_lea.sflag [#allocation3], %s221
        %s223 = sand.u32 %s31, 1
        %s224 = smul.addr %s223, 128
        %s225 = scalar_lea.vmem [#allocation2], %s224
        // Predicated region
        $region41: #{tpu_custom_call.1} parent=39 // pred_check
          %p226 = pneg %p44
        $region42: #{tpu_custom_call.1} parent=39 // pred_check_branch
          %228 = sbr.rel (%p226) target = $region44
        $region43: #{tpu_custom_call.1} parent=39 // pred_region
          %229 = dma.done %s222, 2048
        $region44: #{tpu_custom_call.1} parent=39 // pred_fallthru
          _
        // Predicated region
        $region45: #{tpu_custom_call.1} parent=39 // pred_check
          %p230 = pneg %p65
        $region46: #{tpu_custom_call.1} parent=39 // pred_check_branch
          %232 = sbr.rel (%p230) target = $region48
        $region47: #{tpu_custom_call.1} parent=39 // pred_region
          %233 = dma.done [#allocation6], 64
        $region48: #{tpu_custom_call.1} parent=39 // pred_fallthru
          _
        %s234 = sand.u32 %s31, 1
        %s235 = scalar_lea.sflag [#allocation3], %s234
        %s236 = sand.u32 %s31, 1
        %s237 = smul.addr %s236, 128
        %s238 = scalar_lea.vmem [#allocation2], %s237
        %p239 = pneg %p44
        %p240 = pneg %p41
        %p241 = pneg %p65
        %p242 = pneg %p62
        %p243 = pneg %p86
        %p244 = pneg %p83
        %p245 = pneg %p107
        %p246 = pneg %p104
        %p247 = pneg %p128
        %p248 = pneg %p125
        %p249 = pneg %p154
        %p250 = pneg %p151
        %s251 = sand.u32 %s141, 1
        %s252 = scalar_lea.sflag [#allocation4], %s251
        %s253 = sand.u32 %s141, 1
        %s254 = smul.addr %s253, 128
        %s255 = scalar_lea.vmem [#allocation7], %s254
        %v256 = vld [vmem:[%s225] sm:$0xff]
        %v257 = vld [vmem:[%s225 + $0x8] sm:$0xff]
        %v258 = vld [vmem:[%s225 + $0x10] sm:$0xff]
        %v259 = vld [vmem:[%s225 + $0x18] sm:$0xff]
        %v260 = vld [vmem:[%s225 + $0x20] sm:$0xff]
        %v261 = vld [vmem:[%s225 + $0x28] sm:$0xff]
        %v262 = vld [vmem:[%s225 + $0x30] sm:$0xff]
        %v263 = vld [vmem:[%s225 + $0x38] sm:$0xff]
        %v264 = vld [vmem:[%s225 + $0x40] sm:$0xff]
        %v265 = vld [vmem:[%s225 + $0x48] sm:$0xff]
        %v266 = vld [vmem:[%s225 + $0x50] sm:$0xff]
        %v267 = vld [vmem:[%s225 + $0x58] sm:$0xff]
        %v268 = vld [vmem:[%s225 + $0x60] sm:$0xff]
        %v269 = vld [vmem:[%s225 + $0x68] sm:$0xff]
        %v270 = vld [vmem:[%s225 + $0x70] sm:$0xff]
        %v271 = vld [vmem:[%s225 + $0x78] sm:$0xff]
        %v272 = vadd.f32 %v256, %v257
        %273 = vadd.xlane.f32.xlu0 %v272
        %v274 = vpop.xlane.xlu0 %273
        %v275 = vadd.f32 %v258, %v259
        %276 = vadd.xlane.f32.xlu0 %v275
        %v277 = vpop.xlane.xlu0 %276
        %v278 = vadd.f32 %v260, %v261
        %279 = vadd.xlane.f32.xlu0 %v278
        %v280 = vpop.xlane.xlu0 %279
        %v281 = vadd.f32 %v262, %v263
        %282 = vadd.xlane.f32.xlu0 %v281
        %v283 = vpop.xlane.xlu0 %282
        %v284 = vadd.f32 %v264, %v265
        %285 = vadd.xlane.f32.xlu0 %v284
        %v286 = vpop.xlane.xlu0 %285
        %v287 = vadd.f32 %v266, %v267
        %288 = vadd.xlane.f32.xlu0 %v287
        %v289 = vpop.xlane.xlu0 %288
        %v290 = vadd.f32 %v268, %v269
        %291 = vadd.xlane.f32.xlu0 %v290
        %v292 = vpop.xlane.xlu0 %291
        %v293 = vadd.f32 %v270, %v271
        %294 = vadd.xlane.f32.xlu0 %v293
        %v295 = vpop.xlane.xlu0 %294
        %v296 = vmul.f32 %v274, 0.00390625
        %v297 = vmul.f32 %v277, 0.00390625
        %v298 = vmul.f32 %v280, 0.00390625
        %v299 = vmul.f32 %v283, 0.00390625
        %v300 = vmul.f32 %v286, 0.00390625
        %v301 = vmul.f32 %v289, 0.00390625
        %v302 = vmul.f32 %v292, 0.00390625
        %v303 = vmul.f32 %v295, 0.00390625
        %v304 = vld [vmem:[#allocation5] sm:$0xf]
        %v313 = vlaneseq
        %v314 = vand.u32 %v313, 127
        %v315 = vlaneseq
        %v316 = vshrl.u32 %v315, 7
        %v317 = vsub.s32 %v314, %v316
        %v318 = vrot.slane %v296, %v317
        %v319 = vadd.s32 %v314, 4294967288
        %v320 = vlaneseq
        %v321 = vshrl.u32 %v320, 7
        %v322 = vsub.s32 %v319, %v321
        %v323 = vrot.slane %v297, %v322
        %vm324 = vcmask 130112
        %v325 = vsel %vm324, %v323, %v318
        %v326 = vadd.s32 %v314, 4294967280
        %v327 = vlaneseq
        %v328 = vshrl.u32 %v327, 7
        %v329 = vsub.s32 %v326, %v328
        %v330 = vrot.slane %v298, %v329
        %vm331 = vcmask 195712
        %v332 = vsel %vm331, %v330, %v325
        %v333 = vadd.s32 %v314, 4294967272
        %v334 = vlaneseq
        %v335 = vshrl.u32 %v334, 7
        %v336 = vsub.s32 %v333, %v335
        %v337 = vrot.slane %v299, %v336
        %vm338 = vcmask 261312
        %v339 = vsel %vm338, %v337, %v332
        %v340 = vadd.s32 %v314, 4294967264
        %v341 = vlaneseq
        %v342 = vshrl.u32 %v341, 7
        %v343 = vsub.s32 %v340, %v342
        %v344 = vrot.slane %v300, %v343
        %vm345 = vcmask 326912
        %v346 = vsel %vm345, %v344, %v339
        %v347 = vadd.s32 %v314, 4294967256
        %v348 = vlaneseq
        %v349 = vshrl.u32 %v348, 7
        %v350 = vsub.s32 %v347, %v349
        %v351 = vrot.slane %v301, %v350
        %vm352 = vcmask 392512
        %v353 = vsel %vm352, %v351, %v346
        %v354 = vadd.s32 %v314, 4294967248
        %v355 = vlaneseq
        %v356 = vshrl.u32 %v355, 7
        %v357 = vsub.s32 %v354, %v356
        %v358 = vrot.slane %v302, %v357
        %vm359 = vcmask 458112
        %v360 = vsel %vm359, %v358, %v353
        %v361 = vadd.s32 %v314, 4294967240
        %v362 = vlaneseq
        %v363 = vshrl.u32 %v362, 7
        %v364 = vsub.s32 %v361, %v363
        %v365 = vrot.slane %v303, %v364
        %vm366 = vcmask 523712
        %v367 = vsel %vm366, %v365, %v360
        %vm368 = vcmask 1042434
        %v369 = vsel %vm368, %v367, %v367
        %vm370 = vcmask 1043459
        %v371 = vsel %vm370, %v367, %v369
        %v373 = vmul.f32 %v304, %v371
        %vm374 = vcmask 519168
        %v375 = vsel %vm374, %v373, 0.0
        %376 = vadd.xlane.f32.xlu0 %v375
        %v377 = vpop.xlane.xlu0 %376
        %v378 = vld [vmem:[%s2] sm:$0x1]
        %v380 = vlaneseq
        %v381 = vshrl.u32 %v380, 7
        %v382 = vsub.s32 0, %v381
        %v383 = vrot.slane %v378, %v382
        %385 = vbcast.lane.b32.xlu0 %v383, 256
        %v386 = vpop.permute.xlu0 %385
        %v388 = vadd.f32 %v377, %v386
        %v389 = vmax.f32 %v388, 0.0
        %v390 = vld [vmem:[%s4] sm:$0x1]
        %v391 = vld [vmem:[%s3] sm:$0x1]
        %393 = vset.pattern.permute.xlu0 0
        %394 = vperm.xlu0 %393, %v389
        %v395 = vpop.permute.xlu0 %394
        %v397 = vmul.f32 %v395, %v391
        %v398 = vadd.f32 %v390, %v397
        %v399 = vld [vmem:[%s3 + $0x1] sm:$0x1]
        %v401 = vrot.slane %v399, 7
        %v403 = vmul.f32 %v395, %v401
        %v406 = vunpack.c.l.s4 1966171168
        %v407 = vunpack.c.0.s8 %v406
        %v408 = vlaneseq
        %v409 = vshrl.u32 %v408, 7
        %v410 = vsub.s32 %v407, %v409
        %v411 = vrot.slane %v403, %v410
        %v412 = vcombine.high %v411, %v411
        %v414 = vunpack.c.l.s4 1966171168
        %v415 = vunpack.c.0.s8 %v414
        %v416 = vlaneseq
        %v417 = vshrl.u32 %v416, 7
        %v418 = vsub.s32 %v415, %v417
        %v419 = vrot.slane %v412, %v418
        %v421 = vadd.f32 %v398, %v419
        %v422 = vld [vmem:[%s3 + $0x2] sm:$0x1]
        %v424 = vrot.slane %v422, 6
        %v426 = vmul.f32 %v395, %v424
        %v429 = vunpack.c.l.s4 1966171168
        %v430 = vunpack.c.0.s8 %v429
        %v431 = vlaneseq
        %v432 = vshrl.u32 %v431, 7
        %v433 = vsub.s32 %v430, %v432
        %v434 = vrot.slane %v426, %v433
        %v436 = vunpack.c.l.s4 1966171168
        %v437 = vunpack.c.0.s8 %v436
        %v438 = vlaneseq
        %v439 = vshrl.u32 %v438, 7
        %v440 = vsub.s32 %v437, %v439
        %v441 = vrot.slane %v434, %v440
        %v442 = vcombine.high %v441, %v441
        %v444 = vadd.f32 %v421, %v442
        %v445 = vld [vmem:[%s3 + $0x3] sm:$0x1]
        %v447 = vrot.slane %v445, 5
        %v449 = vmul.f32 %v395, %v447
        %v452 = vunpack.c.l.s4 1966171168
        %v453 = vunpack.c.0.s8 %v452
        %v454 = vlaneseq
        %v455 = vshrl.u32 %v454, 7
        %v456 = vsub.s32 %v453, %v455
        %v457 = vrot.slane %v449, %v456
        %v458 = vcombine.high %v457, %v457
        %v460 = vunpack.c.l.s4 1966171168
        %v461 = vunpack.c.0.s8 %v460
        %v462 = vlaneseq
        %v463 = vshrl.u32 %v462, 7
        %v464 = vsub.s32 %v461, %v463
        %v465 = vrot.slane %v458, %v464
        %v466 = vcombine.high %v465, %v465
        %v468 = vadd.f32 %v444, %v466
        %v469 = vxor.u32 %v468, 2147483648
        %v470 = vmul.f32 %v469, 1.442695
        %v471 = vpow.pop %v470
        %v472 = vadd.f32 %v471, 1.0
        %v473 = vrcp.pop %v472
        %v474 = vmul.f32 1.0, %v473
        %v475 = vlaneseq
        %v476 = vshrl.u32 %v475, 7
        %v477 = vsub.s32 0, %v476
        %v478 = vrot.slane %v474, %v477
        %480 = vbcast.lane.b32.xlu0 %v478, 256
        %v481 = vpop.permute.xlu0 %480
        %s483 = sor.u32 256, 8
        %484 = vbcast.lane.b32.xlu0 %v478, %s483
        %v485 = vpop.permute.xlu0 %484
        %s487 = sor.u32 256, 16
        %488 = vbcast.lane.b32.xlu0 %v478, %s487
        %v489 = vpop.permute.xlu0 %488
        %s491 = sor.u32 256, 24
        %492 = vbcast.lane.b32.xlu0 %v478, %s491
        %v493 = vpop.permute.xlu0 %492
        %s495 = sor.u32 256, 32
        %496 = vbcast.lane.b32.xlu0 %v478, %s495
        %v497 = vpop.permute.xlu0 %496
        %s499 = sor.u32 256, 40
        %500 = vbcast.lane.b32.xlu0 %v478, %s499
        %v501 = vpop.permute.xlu0 %500
        %s503 = sor.u32 256, 48
        %504 = vbcast.lane.b32.xlu0 %v478, %s503
        %v505 = vpop.permute.xlu0 %504
        %s507 = sor.u32 256, 56
        %508 = vbcast.lane.b32.xlu0 %v478, %s507
        %v509 = vpop.permute.xlu0 %508
        %v510 = vmul.f32 %v256, %v481
        %v511 = vmul.f32 %v257, %v481
        %v512 = vmul.f32 %v258, %v485
        %v513 = vmul.f32 %v259, %v485
        %v514 = vmul.f32 %v260, %v489
        %v515 = vmul.f32 %v261, %v489
        %v516 = vmul.f32 %v262, %v493
        %v517 = vmul.f32 %v263, %v493
        %v518 = vmul.f32 %v264, %v497
        %v519 = vmul.f32 %v265, %v497
        %v520 = vmul.f32 %v266, %v501
        %v521 = vmul.f32 %v267, %v501
        %v522 = vmul.f32 %v268, %v505
        %v523 = vmul.f32 %v269, %v505
        %v524 = vmul.f32 %v270, %v509
        %v525 = vmul.f32 %v271, %v509
        %526 = vst [vmem:[%s255] sm:$0xff] %v510
        %527 = vst [vmem:[%s255 + $0x8] sm:$0xff] %v511
        %528 = vst [vmem:[%s255 + $0x10] sm:$0xff] %v512
        %529 = vst [vmem:[%s255 + $0x18] sm:$0xff] %v513
        %530 = vst [vmem:[%s255 + $0x20] sm:$0xff] %v514
        %531 = vst [vmem:[%s255 + $0x28] sm:$0xff] %v515
        %532 = vst [vmem:[%s255 + $0x30] sm:$0xff] %v516
        %533 = vst [vmem:[%s255 + $0x38] sm:$0xff] %v517
        %534 = vst [vmem:[%s255 + $0x40] sm:$0xff] %v518
        %535 = vst [vmem:[%s255 + $0x48] sm:$0xff] %v519
        %536 = vst [vmem:[%s255 + $0x50] sm:$0xff] %v520
        %537 = vst [vmem:[%s255 + $0x58] sm:$0xff] %v521
        %538 = vst [vmem:[%s255 + $0x60] sm:$0xff] %v522
        %539 = vst [vmem:[%s255 + $0x68] sm:$0xff] %v523
        %540 = vst [vmem:[%s255 + $0x70] sm:$0xff] %v524
        %541 = vst [vmem:[%s255 + $0x78] sm:$0xff] %v525
        %s542 = sand.u32 %s141, 1
        %s543 = scalar_lea.sflag [#allocation4], %s542
        %s544 = sand.u32 %s141, 1
        %s545 = smul.addr %s544, 128
        %s546 = scalar_lea.vmem [#allocation7], %s545
        // Predicated region
        $region49: #{tpu_custom_call.1} parent=39 // pred_check
          %p547 = pneg %p151
        $region50: #{tpu_custom_call.1} parent=39 // pred_check_branch
          %549 = sbr.rel (%p547) target = $region52
        $region51: #{tpu_custom_call.1} parent=39 // pred_region
          %s551 = ssub.s32 2048, 2048
          %552 = vsyncadd %s543, %s551
          %s553 = smul.addr %s23, 16
          %s554 = smul.addr %s553, 128
          %s555 = scalar_lea.hbm %s5, %s554
          %s556 = sshll.u32 %s546, 4
          %s557 = int_to_ptr.vmem [resolvable:$true] %s556
          %562 = dma.vmem_to_hbm [thread:$0]  %s557, 2048, %s555, %s543, 256, 256, 16
        $region52: #{tpu_custom_call.1} parent=39 // pred_fallthru
          _
      $region40: #{tpu_custom_call.1} parent=5 // pred_fallthru
        _
      %p563 = scmp.le.s32.totalorder 2, %s18
      // Predicated region
      $region53: #{tpu_custom_call.1} parent=5 // pred_check
        %p564 = pneg %p563
      $region54: #{tpu_custom_call.1} parent=5 // pred_check_branch
        %566 = sbr.rel (%p564) target = $region56
      $region55: #{tpu_custom_call.1} parent=5 // pred_region
        %s567 = ssub.s32 %s18, 2
        // Predicated region
        $region57: #{tpu_custom_call.1} parent=55 // pred_check
          %p568 = pneg %p157
        $region58: #{tpu_custom_call.1} parent=55 // pred_check_branch
          %570 = sbr.rel (%p568) target = $region60
        $region59: #{tpu_custom_call.1} parent=55 // pred_region
          %s571 = sand.u32 %s142, 1
          %s572 = scalar_lea.sflag [#allocation4], %s571
          %s573 = sand.u32 %s142, 1
          %s574 = smul.addr %s573, 128
          %s575 = scalar_lea.vmem [#allocation7], %s574
          %576 = dma.done %s572, 2048
        $region60: #{tpu_custom_call.1} parent=55 // pred_fallthru
          _
      $region56: #{tpu_custom_call.1} parent=5 // pred_fallthru
        _
    $region6: #{tpu_custom_call.1} parent=1 // loop_footer
      %s22 = sadd.s32 1, %s18
    $region7: #{tpu_custom_call.1} parent=1 // loop_footer_branch
      %17 = sbr.rel target = $region3
    $region8: #{tpu_custom_call.1} parent=1 // loop_exit
      _
    %577 = vsyncpa [#allocation3], 1
    %s578 = scalar_lea.sflag [#allocation3], 1
    %579 = vsyncpa %s578, 1
    %580 = vsyncpa [#allocation6], 1
    %581 = vsyncpa [#allocation4], 1
    %s582 = scalar_lea.sflag [#allocation4], 1
    %583 = vsyncpa %s582, 1

</llo_original>
